<compile_context>
chip_gen: v6e
topology: v6e:2x2x1
jax: 0.10.0
libtpu: 0.0.40
codegen_flags: <defaults>
</compile_context>

<pallas_src>
import jax
import jax.numpy as jnp
from jax.experimental import pallas as pl
from jax.experimental.pallas import tpu as pltpu


def _round_up(n, m):
    return ((n + m - 1) // m) * m


def _mlp_embedding_kernel(w_ref, b_ref, x_ref, out_ref):
    # w_ref: (2, IN) f32, VMEM (resident, untiled)
    # b_ref: (2,) f32, SMEM scalars
    # x_ref: (TB, IN) VMEM tile of x in its natural row-major layout
    # out_ref: (4, TB) VMEM lane-dense packed slab:
    #          row0 = out1[:,0], row1 = out1[:,1], row2 = r, row3 = y_max
    x = x_ref[...].astype(jnp.float32)                 # upcast if streamed bf16
    w = w_ref[...]                                     # (2, IN)

    # VPU multiply + XLU lane-reduce over the IN=20 features (MXU skipped).
    lin0 = jnp.sum(x * w[0:1, :], axis=-1, keepdims=True)   # (TB, 1)
    lin1 = jnp.sum(x * w[1:2, :], axis=-1, keepdims=True)   # (TB, 1)

    # One tiny in-VMEM transpose (~TB*2 elements) -> lane-dense (2, TB).
    lin_t = jnp.transpose(jnp.concatenate([lin0, lin1], axis=-1))  # (2, TB)

    # Bias + activations on lane-dense (1, TB) rows; direct row stores.
    out0 = lin_t[0:1, :] + b_ref[0]
    out1 = lin_t[1:2, :] + b_ref[1]
    out_ref[0:1, :] = out0
    out_ref[1:2, :] = out1
    out_ref[2:3, :] = jax.nn.sigmoid(out0)
    out_ref[3:4, :] = jnp.tanh(out1) + 1.0


def mlp_embedding_forward(x, weight, bias, *, block_b=16384, return_packed=False):
    """x: (B, IN), weight: (2, IN) f32, bias: (2,) f32.

    Returns (out1, r, y_max) with shapes (B, 2), (B,), (B,).
    If return_packed=True, returns the lane-dense (4, B) slab directly
    (rows = [out1[:,0], out1[:,1], r, y_max]) and skips the host-side unpack.
    """
    B, in_features = x.shape
    assert weight.shape == (2, in_features)
    assert bias.shape == (2,)

    if B <= 128:
        tb = B                      # single full-array block (full-dim exception)
    else:
        # Lane-axis tile, multiple of 128; >=2 grid steps when possible (v7x);
        # capped by block_b so the double-buffered footprint stays in VMEM.
        tb = min(int(block_b), max(128, _round_up(pl.cdiv(B, 2), 128)))
    grid = (pl.cdiv(B, tb),)        # ragged last block handled by Pallas

    itemsize = jnp.dtype(x.dtype).itemsize
    packed = pl.pallas_call(
        _mlp_embedding_kernel,
        out_shape=jax.ShapeDtypeStruct((4, B), jnp.float32),
        grid=grid,
        in_specs=[
            pl.BlockSpec(memory_space=pltpu.MemorySpace.VMEM),     # weight (2, IN)
            pl.BlockSpec(memory_space=pltpu.MemorySpace.SMEM),     # bias (2,)
            pl.BlockSpec((tb, in_features), lambda i: (i, 0)),     # x row tile
        ],
        out_specs=pl.BlockSpec((4, tb), lambda i: (0, i)),
        compiler_params=pltpu.CompilerParams(
            dimension_semantics=("parallel",)),
        cost_estimate=pl.CostEstimate(
            flops=4 * B * in_features,
            transcendentals=2 * B,
            bytes_accessed=int(B * (in_features * itemsize + 16) + 4 * (2 * in_features + 2))),
    )(weight.astype(jnp.float32), bias.astype(jnp.float32), x)

    if return_packed:
        return packed               # consumers can read rows directly (no unpack)

    out1 = packed[0:2, :].T         # (B, 2)  -- small layout-only XLA transpose
    r = packed[2, :]                # (B,)
    y_max = packed[3, :]            # (B,)
    return out1, r, y_max


def init_params(key, input_size=20):
    # Matches the PyTorch init: weight ~ xavier_uniform, bias = 0.
    bound = (6.0 / (input_size + 2)) ** 0.5
    weight = jax.random.uniform(
        key, (2, input_size), minval=-bound, maxval=bound, dtype=jnp.float32)
    bias = jnp.zeros((2,), dtype=jnp.float32)
    # TODO(synk): fc2 (Linear(out_1_size, 2)) and ReLU exist in __init__ but are
    # unused in forward(); intentionally not implemented.
    return weight, bias


if __name__ == "__main__":
    key = jax.random.PRNGKey(0)
    k_x, k_w = jax.random.split(key)

    # Small shapes; B deliberately not a multiple of 128 to exercise the
    # multi-tile + ragged-last-block path (no explicit padding anywhere).
    B, input_size = 200, 20
    x = jax.random.normal(k_x, (B, input_size), dtype=jnp.float32)
    weight, bias = init_params(k_w, input_size=input_size)

    fwd = jax.jit(mlp_embedding_forward)
    out1, r, y_max = fwd(x, weight, bias)
    jax.block_until_ready((out1, r, y_max))

    # Reference in plain JAX (HIGHEST precision so the check isn't polluted by
    # XLA's default bf16 matmul pass on TPU).
    ref_out1 = jnp.dot(x, weight.T, precision=jax.lax.Precision.HIGHEST) + bias
    ref_r = jax.nn.sigmoid(ref_out1[:, 0])
    ref_ymax = jnp.tanh(ref_out1[:, 1]) + 1.0

    assert out1.shape == (B, 2) and r.shape == (B,) and y_max.shape == (B,)
    assert jnp.allclose(out1, ref_out1, atol=1e-5, rtol=1e-5), "out1 mismatch"
    assert jnp.allclose(r, ref_r, atol=1e-5, rtol=1e-5), "r mismatch"
    assert jnp.allclose(y_max, ref_ymax, atol=1e-5, rtol=1e-5), "y_max mismatch"

    print("KERNEL_OK")
</pallas_src>

<mosaic_0001>
module attributes {stable_mosaic.version = 11 : i64} {
  func.func @_mlp_embedding_kernel(%arg0: i32, %arg1: memref<2x20xf32, #tpu.memory_space<vmem>>, %arg2: memref<2xf32, #tpu.memory_space<smem>>, %arg3: memref<128x20xf32, #tpu.memory_space<vmem>>, %arg4: memref<4x128xf32, #tpu.memory_space<vmem>>) attributes {dimension_semantics = [#tpu.dimension_semantics<parallel>], iteration_bounds = array<i64: 2>, scalar_prefetch = 0 : i64, scratch_operands = 0 : i64, tpu.core_type = #tpu.core_type<tc>, window_params = [{pipeline_mode = #tpu.pipeline_mode<synchronous>, transform_indices = @transform_0, window_bounds = array<i64: 2, 20>}, {transform_indices = @transform_1, window_bounds = array<i64: 2>}, {transform_indices = @transform_2, window_bounds = array<i64: 128, 20>}, {transform_indices = @transform_3, window_bounds = array<i64: 4, 128>}]} {
    %c0 = arith.constant 0 : index
    %c0_0 = arith.constant 0 : index
    %0 = vector.load %arg3[%c0, %c0_0] : memref<128x20xf32, #tpu.memory_space<vmem>>, vector<128x20xf32>
    %c0_1 = arith.constant 0 : index
    %c0_2 = arith.constant 0 : index
    %1 = vector.load %arg1[%c0_1, %c0_2] : memref<2x20xf32, #tpu.memory_space<vmem>>, vector<2x20xf32>
    %2 = vector.extract_strided_slice %1 {offsets = [0, 0], sizes = [1, 20], strides = [1, 1]} : vector<2x20xf32> to vector<1x20xf32>
    %3 = vector.broadcast %2 : vector<1x20xf32> to vector<128x20xf32>
    %4 = arith.mulf %0, %3 : vector<128x20xf32>
    %cst = arith.constant dense<0.000000e+00> : vector<128xf32>
    %5 = vector.multi_reduction <add>, %4, %cst [1] : vector<128x20xf32> to vector<128xf32>
    %6 = vector.shape_cast %5 : vector<128xf32> to vector<128x1xf32>
    %7 = vector.extract_strided_slice %1 {offsets = [1, 0], sizes = [1, 20], strides = [1, 1]} : vector<2x20xf32> to vector<1x20xf32>
    %8 = vector.broadcast %7 : vector<1x20xf32> to vector<128x20xf32>
    %9 = arith.mulf %0, %8 : vector<128x20xf32>
    %cst_3 = arith.constant dense<0.000000e+00> : vector<128xf32>
    %10 = vector.multi_reduction <add>, %9, %cst_3 [1] : vector<128x20xf32> to vector<128xf32>
    %11 = vector.shape_cast %10 : vector<128xf32> to vector<128x1xf32>
    %12 = tpu.concatenate %6, %11 in 1 : vector<128x1xf32>, vector<128x1xf32> -> vector<128x2xf32>
    %13 = tpu.transpose %12, [1, 0] : vector<128x2xf32> -> vector<2x128xf32>
    %14 = vector.extract_strided_slice %13 {offsets = [0, 0], sizes = [1, 128], strides = [1, 1]} : vector<2x128xf32> to vector<1x128xf32>
    %c0_4 = arith.constant 0 : index
    %15 = memref.load %arg2[%c0_4] : memref<2xf32, #tpu.memory_space<smem>>
    %16 = vector.broadcast %15 : f32 to vector<1x128xf32>
    %17 = arith.addf %14, %16 : vector<1x128xf32>
    %18 = vector.extract_strided_slice %13 {offsets = [1, 0], sizes = [1, 128], strides = [1, 1]} : vector<2x128xf32> to vector<1x128xf32>
    %c1 = arith.constant 1 : index
    %19 = memref.load %arg2[%c1] : memref<2xf32, #tpu.memory_space<smem>>
    %20 = vector.broadcast %19 : f32 to vector<1x128xf32>
    %21 = arith.addf %18, %20 : vector<1x128xf32>
    %c0_5 = arith.constant 0 : index
    %c0_6 = arith.constant 0 : index
    %22 = vector.load %arg4[%c0_5, %c0_6] : memref<4x128xf32, #tpu.memory_space<vmem>>, vector<1x128xf32>
    tpu.vector_store %arg4[%c0_5, %c0_6], %17 {strides = array<i32>} : memref<4x128xf32, #tpu.memory_space<vmem>>, vector<1x128xf32>,
    %c1_7 = arith.constant 1 : index
    %c0_8 = arith.constant 0 : index
    %23 = vector.load %arg4[%c1_7, %c0_8] : memref<4x128xf32, #tpu.memory_space<vmem>>, vector<1x128xf32>
    tpu.vector_store %arg4[%c1_7, %c0_8], %21 {strides = array<i32>} : memref<4x128xf32, #tpu.memory_space<vmem>>, vector<1x128xf32>,
    %24 = arith.negf %17 : vector<1x128xf32>
    %25 = math.exp %24 : vector<1x128xf32>
    %cst_9 = arith.constant 1.000000e+00 : f32
    %26 = vector.broadcast %cst_9 : f32 to vector<1x128xf32>
    %27 = arith.addf %26, %25 : vector<1x128xf32>
    %28 = arith.divf %26, %27 : vector<1x128xf32>
    %c2 = arith.constant 2 : index
    %c0_10 = arith.constant 0 : index
    %29 = vector.load %arg4[%c2, %c0_10] : memref<4x128xf32, #tpu.memory_space<vmem>>, vector<1x128xf32>
    tpu.vector_store %arg4[%c2, %c0_10], %28 {strides = array<i32>} : memref<4x128xf32, #tpu.memory_space<vmem>>, vector<1x128xf32>,
    %30 = math.tanh %21 : vector<1x128xf32>
    %cst_11 = arith.constant 1.000000e+00 : f32
    %31 = vector.broadcast %cst_11 : f32 to vector<1x128xf32>
    %32 = arith.addf %30, %31 : vector<1x128xf32>
    %c3 = arith.constant 3 : index
    %c0_12 = arith.constant 0 : index
    %33 = vector.load %arg4[%c3, %c0_12] : memref<4x128xf32, #tpu.memory_space<vmem>>, vector<1x128xf32>
    tpu.vector_store %arg4[%c3, %c0_12], %32 {strides = array<i32>} : memref<4x128xf32, #tpu.memory_space<vmem>>, vector<1x128xf32>,
    return
  }
  func.func @transform_0(%arg0: i32) -> (i32, i32) {
    %c0_i32 = arith.constant 0 : i32
    %c0_i32_0 = arith.constant 0 : i32
    %c0_i32_1 = arith.constant 0 : i32
    return %c0_i32, %c0_i32_0 : i32, i32
  }
  func.func @transform_1(%arg0: i32) -> i32 {
    %c0_i32 = arith.constant 0 : i32
    %c0_i32_0 = arith.constant 0 : i32
    return %c0_i32 : i32
  }
  func.func @transform_2(%arg0: i32) -> (i32, i32) {
    %c0_i32 = arith.constant 0 : i32
    %c0_i32_0 = arith.constant 0 : i32
    return %arg0, %c0_i32 : i32, i32
  }
  func.func @transform_3(%arg0: i32) -> (i32, i32) {
    %c0_i32 = arith.constant 0 : i32
    %c0_i32_0 = arith.constant 0 : i32
    return %c0_i32, %arg0 : i32, i32
  }
}

</mosaic_0001>

<llo_original>
// kernel: mlp_embedding_forward.1
$region0: #{mlp_embedding_forward.1}
  #allocation0 [shape = 'u32[]', space=smem, size = 0x4, offset = 0x4, fixed_abs, tag = 'smem constant byte address 0x4 - core index']
  #allocation1 [shape = 'u32[144,128]{1,0:T(1,128)}', space=vmem, size = 0x12000, scoped, tag = 'internal scratch']
  %s0 = inlined_call_operand.vmem [shape: f32[2,20], index: 0, kind: input, shape index: {}]
  %s1 = inlined_call_operand.vmem [shape: f32[2], index: 1, kind: input, shape index: {}]
  %s2 = inlined_call_operand.vmem [shape: f32[200,20], index: 2, kind: input, shape index: {}]
  %s3 = inlined_call_operand.vmem [shape: f32[4,200], index: 3, kind: output, shape index: {}]
  %s4 = sld [smem:[#allocation0]]
  $region49: #{mlp_embedding_forward.1} parent=0
    _
  %s6 = ssub.s32 1, %s4
  %s7 = scalar_select 0, %s6, %s4
  $region1: #{mlp_embedding_forward.1} parent=0
    #allocation2 [shape = 'u8[512]{0}', space=smem, size = 0x200, scoped, tag = 'input window, operand 1, single buffered']
    #allocation3 [shape = 's32[2]{0}', space=sflag, size = 0x8, scoped, tag = 'scoped memory for mlp_embedding_forward.1']
    %8 = vsyncpa [#allocation3], 0
    loop: start=0, step=1, limit=4
    $region2: #{mlp_embedding_forward.1} parent=1 // loop_pre_header
      _
    $region3: #{mlp_embedding_forward.1} parent=1 // loop_header
      %s10 = sphi 0, %s14
      %p11 = scmp.ge.s32.totalorder %s10, 4
      %s18 = sphi 0, %s18
      %s20 = sphi 0, %s18
      %s21 = sphi 0, %s20
      %s35 = sphi 0, %s21
      %s39 = sphi 0, %s39
      %s41 = sphi 0, %s39
      %s42 = sphi 0, %s41
      %s56 = sphi 0, %s42
      %s62 = sphi 0, %s64
      %s65 = sphi 0, %s62
      %s66 = sphi 0, %s65
      %s82 = sphi 0, %s66
      %s88 = sphi 0, %s90
      %s91 = sphi 0, %s88
      %s92 = sphi 0, %s91
      %s108 = sphi 0, %s92
    $region4: #{mlp_embedding_forward.1} parent=1 // loop_header_branch
      %13 = sbr.rel (%p11) target = $region8
    $region5: #{mlp_embedding_forward.1} parent=1 // loop_body
      %s15 = ssub.s32 %s10, 1
      %s16 = ssub.s32 %s10, 2
      %s17 = sadd.s32 %s10, 1
      %s19 = sadd.s32 %s18, 1
      %p22 = scmp.eq.s32.totalorder %s10, 1
      %p23 = scmp.ne.s32.totalorder %s18, %s20
      %p24 = scmp.eq.s32.totalorder %s10, 0
      %p25 = por %p23, %p24
      %p26 = scmp.ne.s32.totalorder %s18, %s20
      %p27 = scmp.eq.s32.totalorder %s15, 1
      %p28 = por %p26, %p27
      %p29 = scmp.ne.s32.totalorder %s20, %s21
      %p30 = scmp.eq.s32.totalorder %s15, 0
      %p31 = por %p29, %p30
      %p32 = scmp.ne.s32.totalorder %s20, %s21
      %p33 = scmp.eq.s32.totalorder %s16, 1
      %p34 = por %p32, %p33
      %p36 = scmp.ne.s32.totalorder %s21, %s35
      %p37 = scmp.eq.s32.totalorder %s16, 0
      %p38 = por %p36, %p37
      %s40 = sadd.s32 %s39, 1
      %p43 = scmp.eq.s32.totalorder %s10, 1
      %p44 = scmp.ne.s32.totalorder %s39, %s41
      %p45 = scmp.eq.s32.totalorder %s10, 0
      %p46 = por %p44, %p45
      %p47 = scmp.ne.s32.totalorder %s39, %s41
      %p48 = scmp.eq.s32.totalorder %s15, 1
      %p49 = por %p47, %p48
      %p50 = scmp.ne.s32.totalorder %s41, %s42
      %p51 = scmp.eq.s32.totalorder %s15, 0
      %p52 = por %p50, %p51
      %p53 = scmp.ne.s32.totalorder %s41, %s42
      %p54 = scmp.eq.s32.totalorder %s16, 1
      %p55 = por %p53, %p54
      %p57 = scmp.ne.s32.totalorder %s42, %s56
      %p58 = scmp.eq.s32.totalorder %s16, 0
      %p59 = por %p57, %p58
      %s60 = ssub.s32 %s10, %s17
      %p61 = scmp.eq.s32.totalorder %s60, 0
      %s63 = sadd.s32 %s62, 1
      %s64 = scalar_select %p61, %s62, %s63
      %p67 = pneg %p61
      %p68 = scmp.eq.s32.totalorder %s10, 1
      %p69 = por %p67, %p68
      %p70 = scmp.ne.s32.totalorder %s62, %s65
      %p71 = scmp.eq.s32.totalorder %s10, 0
      %p72 = por %p70, %p71
      %p73 = scmp.ne.s32.totalorder %s62, %s65
      %p74 = scmp.eq.s32.totalorder %s15, 1
      %p75 = por %p73, %p74
      %p76 = scmp.ne.s32.totalorder %s65, %s66
      %p77 = scmp.eq.s32.totalorder %s15, 0
      %p78 = por %p76, %p77
      %p79 = scmp.ne.s32.totalorder %s65, %s66
      %p80 = scmp.eq.s32.totalorder %s16, 1
      %p81 = por %p79, %p80
      %p83 = scmp.ne.s32.totalorder %s66, %s82
      %p84 = scmp.eq.s32.totalorder %s16, 0
      %p85 = por %p83, %p84
      %s86 = ssub.s32 %s10, %s17
      %p87 = scmp.eq.s32.totalorder %s86, 0
      %s89 = sadd.s32 %s88, 1
      %s90 = scalar_select %p87, %s88, %s89
      %p93 = pneg %p87
      %p94 = scmp.eq.s32.totalorder %s10, 1
      %p95 = por %p93, %p94
      %p96 = scmp.ne.s32.totalorder %s88, %s91
      %p97 = scmp.eq.s32.totalorder %s10, 0
      %p98 = por %p96, %p97
      %p99 = scmp.ne.s32.totalorder %s88, %s91
      %p100 = scmp.eq.s32.totalorder %s15, 1
      %p101 = por %p99, %p100
      %p102 = scmp.ne.s32.totalorder %s91, %s92
      %p103 = scmp.eq.s32.totalorder %s15, 0
      %p104 = por %p102, %p103
      %p105 = scmp.ne.s32.totalorder %s91, %s92
      %p106 = scmp.eq.s32.totalorder %s16, 1
      %p107 = por %p105, %p106
      %p109 = scmp.ne.s32.totalorder %s92, %s108
      %p110 = scmp.eq.s32.totalorder %s16, 0
      %p111 = por %p109, %p110
      %p112 = scmp.le.s32.totalorder 1, %s10
      %p113 = scmp.lt.s32.totalorder %s10, 3
      %p114 = pnand %p112, %p113
      %p115 = pneg %p114
      // Predicated region
      $region9: #{mlp_embedding_forward.1} parent=5 // pred_check
        _
      $region10: #{mlp_embedding_forward.1} parent=5 // pred_check_branch
        %117 = sbr.rel (%p114) target = $region12
      $region11: #{mlp_embedding_forward.1} parent=5 // pred_region
        %s118 = ssub.s32 %s10, 1
        // Predicated region
        $region13: #{mlp_embedding_forward.1} parent=11 // pred_check
          %p119 = pneg %p31
        $region14: #{mlp_embedding_forward.1} parent=11 // pred_check_branch
          %121 = sbr.rel (%p119) target = $region16
        $region15: #{mlp_embedding_forward.1} parent=11 // pred_region
          _
        $region16: #{mlp_embedding_forward.1} parent=11 // pred_fallthru
          _
        // Predicated region
        $region17: #{mlp_embedding_forward.1} parent=11 // pred_check
          %p122 = pneg %p52
        $region18: #{mlp_embedding_forward.1} parent=11 // pred_check_branch
          %124 = sbr.rel (%p122) target = $region20
        $region19: #{mlp_embedding_forward.1} parent=11 // pred_region
          %s126 = ssub.s32 16, 16
          %127 = vsyncadd [#allocation3], %s126
          %s129 = sshll.u32 %s1, 4
          %s130 = int_to_ptr.vmem [resolvable:$true] %s129
          %132 = dma.vmem_to_smem %s130, 16, [#allocation2], [#allocation3]
        $region20: #{mlp_embedding_forward.1} parent=11 // pred_fallthru
          _
      $region12: #{mlp_embedding_forward.1} parent=5 // pred_fallthru
        _
      %p133 = scmp.lt.s32.totalorder %s10, 2
      // Predicated region
      $region21: #{mlp_embedding_forward.1} parent=5 // pred_check
        %p134 = pneg %p133
      $region22: #{mlp_embedding_forward.1} parent=5 // pred_check_branch
        %136 = sbr.rel (%p134) target = $region24
      $region23: #{mlp_embedding_forward.1} parent=5 // pred_region
        // Predicated region
        $region25: #{mlp_embedding_forward.1} parent=23 // pred_check
          %p137 = pneg %p72
        $region26: #{mlp_embedding_forward.1} parent=23 // pred_check_branch
          %139 = sbr.rel (%p137) target = $region28
        $region27: #{mlp_embedding_forward.1} parent=23 // pred_region
          %s140 = smul.u32 16, %s10
          %s141 = ssub.s32 25, %s140
          %p142 = scmp.lt.s32.totalorder %s141, 16
          %s143 = scalar_select %p142, %s141, 16
          %s144 = smul.u32 128, %s143
          %p145 = scmp.lt.s32.totalorder %s140, 24
          %s146 = scalar_select %p145, %s140, 24
          %s147 = smul.addr %s146, 8
          %s148 = scalar_lea.vmem %s2, %s147
          %s149 = smul.u32 16, %s10
          %s150 = ssub.s32 25, %s149
          %p151 = scmp.lt.s32.totalorder %s150, 16
          %s152 = scalar_select %p151, %s150, 16
          %s153 = smul.u32 128, %s152
        $region28: #{mlp_embedding_forward.1} parent=23 // pred_fallthru
          _
      $region24: #{mlp_embedding_forward.1} parent=5 // pred_fallthru
        _
      %p154 = scmp.le.s32.totalorder 1, %s10
      %p155 = scmp.lt.s32.totalorder %s10, 3
      %p156 = pnand %p154, %p155
      %p157 = pneg %p156
      // Predicated region
      $region29: #{mlp_embedding_forward.1} parent=5 // pred_check
        _
      $region30: #{mlp_embedding_forward.1} parent=5 // pred_check_branch
        %159 = sbr.rel (%p156) target = $region32
      $region31: #{mlp_embedding_forward.1} parent=5 // pred_region
        %s160 = ssub.s32 %s10, 1
        // Predicated region
        $region33: #{mlp_embedding_forward.1} parent=31 // pred_check
          %p161 = pneg %p52
        $region34: #{mlp_embedding_forward.1} parent=31 // pred_check_branch
          %163 = sbr.rel (%p161) target = $region36
        $region35: #{mlp_embedding_forward.1} parent=31 // pred_region
          %164 = dma.done [#allocation3], 16
        $region36: #{mlp_embedding_forward.1} parent=31 // pred_fallthru
          _
        %165 = sfence
        %p166 = pneg %p31
        %p167 = pneg %p28
        %p168 = pneg %p52
        %p169 = pneg %p49
        %s170 = smul.u32 16, %s15
        %s171 = ssub.s32 25, %s170
        %p172 = scmp.lt.s32.totalorder %s171, 16
        %s173 = scalar_select %p172, %s171, 16
        %s174 = smul.u32 128, %s173
        %p175 = scmp.lt.s32.totalorder %s170, 24
        %s176 = scalar_select %p175, %s170, 24
        %s177 = smul.addr %s176, 8
        %s178 = scalar_lea.vmem %s2, %s177
        %p179 = pneg %p78
        %p180 = pneg %p75
        %p181 = pneg %p104
        %p182 = pneg %p101
        %p183 = scmp.lt.s32.totalorder %s15, 1
        %s184 = scalar_select %p183, %s15, 1
        %s185 = smul.addr %s184, 4
        %s186 = scalar_lea.vmem %s3, %s185
        %s187 = smul.u32 16, %s15
        %s188 = ssub.s32 25, %s187
        %p189 = scmp.lt.s32.totalorder %s188, 16
        %s190 = scalar_select %p189, %s188, 16
        %s191 = smul.u32 128, %s190
        %p192 = scmp.lt.s32.totalorder %s187, 24
        %s193 = scalar_select %p192, %s187, 24
        %s194 = smul.addr %s193, 8
        %s195 = scalar_lea.vmem %s2, %s194
        %s196 = smul.u32 16, %s15
        %s197 = ssub.s32 25, %s196
        %p198 = scmp.lt.s32.totalorder %s197, 16
        %s199 = scalar_select %p198, %s197, 16
        %s200 = smul.u32 128, %s199
        %p201 = scmp.lt.s32.totalorder %s15, 1
        %s202 = scalar_select %p201, %s15, 1
        %s203 = smul.addr %s202, 4
        %s204 = scalar_lea.vmem %s3, %s203
        %v205 = vld [vmem:[%s195] sm:$0xff]
        %v206 = vld [vmem:[%s195 + $0x8] sm:$0xff]
        %v207 = vld [vmem:[%s195 + $0x10] sm:$0xff]
        %v208 = vld [vmem:[%s195 + $0x18] sm:$0xff]
        %v209 = vld [vmem:[%s195 + $0x20] sm:$0xff]
        %v210 = vld [vmem:[%s195 + $0x28] sm:$0xff]
        %v211 = vld [vmem:[%s195 + $0x30] sm:$0xff]
        %v212 = vld [vmem:[%s195 + $0x38] sm:$0xff]
        %v213 = vld [vmem:[%s195 + $0x40] sm:$0xff]
        %v214 = vld [vmem:[%s195 + $0x48] sm:$0xff]
        %v215 = vld [vmem:[%s195 + $0x50] sm:$0xff]
        %v216 = vld [vmem:[%s195 + $0x58] sm:$0xff]
        %v217 = vld [vmem:[%s195 + $0x60] sm:$0xff]
        %v218 = vld [vmem:[%s195 + $0x68] sm:$0xff]
        %v219 = vld [vmem:[%s195 + $0x70] sm:$0xff]
        %v220 = vld [vmem:[%s195 + $0x78] sm:$0xff]
        %v221 = vld [vmem:[%s0] sm:$0x3]
        %v222 = vlaneseq
        %v223 = vshrl.u32 %v222, 7
        %v224 = vsub.s32 0, %v223
        %v225 = vrot.slane %v221, %v224
        %v226 = vmul.f32 %v205, %v225
        %v227 = vmul.f32 %v206, %v225
        %v228 = vmul.f32 %v207, %v225
        %v229 = vmul.f32 %v208, %v225
        %v230 = vmul.f32 %v209, %v225
        %v231 = vmul.f32 %v210, %v225
        %v232 = vmul.f32 %v211, %v225
        %v233 = vmul.f32 %v212, %v225
        %v234 = vmul.f32 %v213, %v225
        %v235 = vmul.f32 %v214, %v225
        %v236 = vmul.f32 %v215, %v225
        %v237 = vmul.f32 %v216, %v225
        %v238 = vmul.f32 %v217, %v225
        %v239 = vmul.f32 %v218, %v225
        %v240 = vmul.f32 %v219, %v225
        %v241 = vmul.f32 %v220, %v225
        %vm242 = vcmask 162816
        %v243 = vsel %vm242, %v226, 0.0
        %244 = vadd.xlane.f32.xlu0 %v243
        %v245 = vpop.xlane.xlu0 %244
        %v246 = vsel %vm242, %v227, 0.0
        %247 = vadd.xlane.f32.xlu0 %v246
        %v248 = vpop.xlane.xlu0 %247
        %v249 = vsel %vm242, %v228, 0.0
        %250 = vadd.xlane.f32.xlu0 %v249
        %v251 = vpop.xlane.xlu0 %250
        %v252 = vsel %vm242, %v229, 0.0
        %253 = vadd.xlane.f32.xlu0 %v252
        %v254 = vpop.xlane.xlu0 %253
        %v255 = vsel %vm242, %v230, 0.0
        %256 = vadd.xlane.f32.xlu0 %v255
        %v257 = vpop.xlane.xlu0 %256
        %v258 = vsel %vm242, %v231, 0.0
        %259 = vadd.xlane.f32.xlu0 %v258
        %v260 = vpop.xlane.xlu0 %259
        %v261 = vsel %vm242, %v232, 0.0
        %262 = vadd.xlane.f32.xlu0 %v261
        %v263 = vpop.xlane.xlu0 %262
        %v264 = vsel %vm242, %v233, 0.0
        %265 = vadd.xlane.f32.xlu0 %v264
        %v266 = vpop.xlane.xlu0 %265
        %v267 = vsel %vm242, %v234, 0.0
        %268 = vadd.xlane.f32.xlu0 %v267
        %v269 = vpop.xlane.xlu0 %268
        %v270 = vsel %vm242, %v235, 0.0
        %271 = vadd.xlane.f32.xlu0 %v270
        %v272 = vpop.xlane.xlu0 %271
        %v273 = vsel %vm242, %v236, 0.0
        %274 = vadd.xlane.f32.xlu0 %v273
        %v275 = vpop.xlane.xlu0 %274
        %v276 = vsel %vm242, %v237, 0.0
        %277 = vadd.xlane.f32.xlu0 %v276
        %v278 = vpop.xlane.xlu0 %277
        %v279 = vsel %vm242, %v238, 0.0
        %280 = vadd.xlane.f32.xlu0 %v279
        %v281 = vpop.xlane.xlu0 %280
        %v282 = vsel %vm242, %v239, 0.0
        %283 = vadd.xlane.f32.xlu0 %v282
        %v284 = vpop.xlane.xlu0 %283
        %v285 = vsel %vm242, %v240, 0.0
        %286 = vadd.xlane.f32.xlu0 %v285
        %v287 = vpop.xlane.xlu0 %286
        %v288 = vsel %vm242, %v241, 0.0
        %289 = vadd.xlane.f32.xlu0 %v288
        %v290 = vpop.xlane.xlu0 %289
        %v291 = vlaneseq
        %v292 = vshrl.u32 %v291, 7
        %v293 = vsub.s32 1, %v292
        %v294 = vrot.slane %v221, %v293
        %v295 = vmul.f32 %v205, %v294
        %v296 = vmul.f32 %v206, %v294
        %v297 = vmul.f32 %v207, %v294
        %v298 = vmul.f32 %v208, %v294
        %v299 = vmul.f32 %v209, %v294
        %v300 = vmul.f32 %v210, %v294
        %v301 = vmul.f32 %v211, %v294
        %v302 = vmul.f32 %v212, %v294
        %v303 = vmul.f32 %v213, %v294
        %v304 = vmul.f32 %v214, %v294
        %v305 = vmul.f32 %v215, %v294
        %v306 = vmul.f32 %v216, %v294
        %v307 = vmul.f32 %v217, %v294
        %v308 = vmul.f32 %v218, %v294
        %v309 = vmul.f32 %v219, %v294
        %v310 = vmul.f32 %v220, %v294
        %v311 = vsel %vm242, %v295, 0.0
        %312 = vadd.xlane.f32.xlu0 %v311
        %v313 = vpop.xlane.xlu0 %312
        %v314 = vsel %vm242, %v296, 0.0
        %315 = vadd.xlane.f32.xlu0 %v314
        %v316 = vpop.xlane.xlu0 %315
        %v317 = vsel %vm242, %v297, 0.0
        %318 = vadd.xlane.f32.xlu0 %v317
        %v319 = vpop.xlane.xlu0 %318
        %v320 = vsel %vm242, %v298, 0.0
        %321 = vadd.xlane.f32.xlu0 %v320
        %v322 = vpop.xlane.xlu0 %321
        %v323 = vsel %vm242, %v299, 0.0
        %324 = vadd.xlane.f32.xlu0 %v323
        %v325 = vpop.xlane.xlu0 %324
        %v326 = vsel %vm242, %v300, 0.0
        %327 = vadd.xlane.f32.xlu0 %v326
        %v328 = vpop.xlane.xlu0 %327
        %v329 = vsel %vm242, %v301, 0.0
        %330 = vadd.xlane.f32.xlu0 %v329
        %v331 = vpop.xlane.xlu0 %330
        %v332 = vsel %vm242, %v302, 0.0
        %333 = vadd.xlane.f32.xlu0 %v332
        %v334 = vpop.xlane.xlu0 %333
        %v335 = vsel %vm242, %v303, 0.0
        %336 = vadd.xlane.f32.xlu0 %v335
        %v337 = vpop.xlane.xlu0 %336
        %v338 = vsel %vm242, %v304, 0.0
        %339 = vadd.xlane.f32.xlu0 %v338
        %v340 = vpop.xlane.xlu0 %339
        %v341 = vsel %vm242, %v305, 0.0
        %342 = vadd.xlane.f32.xlu0 %v341
        %v343 = vpop.xlane.xlu0 %342
        %v344 = vsel %vm242, %v306, 0.0
        %345 = vadd.xlane.f32.xlu0 %v344
        %v346 = vpop.xlane.xlu0 %345
        %v347 = vsel %vm242, %v307, 0.0
        %348 = vadd.xlane.f32.xlu0 %v347
        %v349 = vpop.xlane.xlu0 %348
        %v350 = vsel %vm242, %v308, 0.0
        %351 = vadd.xlane.f32.xlu0 %v350
        %v352 = vpop.xlane.xlu0 %351
        %v353 = vsel %vm242, %v309, 0.0
        %354 = vadd.xlane.f32.xlu0 %v353
        %v355 = vpop.xlane.xlu0 %354
        %v356 = vsel %vm242, %v310, 0.0
        %357 = vadd.xlane.f32.xlu0 %v356
        %v358 = vpop.xlane.xlu0 %357
        %vm359 = vcmask 7168
        %v360 = vsel %vm359, %v245, %v313
        %v361 = vsel %vm359, %v248, %v316
        %v362 = vsel %vm359, %v251, %v319
        %v363 = vsel %vm359, %v254, %v322
        %v364 = vsel %vm359, %v257, %v325
        %v365 = vsel %vm359, %v260, %v328
        %v366 = vsel %vm359, %v263, %v331
        %v367 = vsel %vm359, %v266, %v334
        %v368 = vsel %vm359, %v269, %v337
        %v369 = vsel %vm359, %v272, %v340
        %v370 = vsel %vm359, %v275, %v343
        %v371 = vsel %vm359, %v278, %v346
        %v372 = vsel %vm359, %v281, %v349
        %v373 = vsel %vm359, %v284, %v352
        %v374 = vsel %vm359, %v287, %v355
        %v375 = vsel %vm359, %v290, %v358
        %376 = vxpose.xlu0.b32.start [1/16] %v360, 128
        %377 = vxpose.xlu0.b32.cont [2/16] %v361, 128
        %378 = vxpose.xlu0.b32.cont [3/16] %v362, 128
        %379 = vxpose.xlu0.b32.cont [4/16] %v363, 128
        %380 = vxpose.xlu0.b32.cont [5/16] %v364, 128
        %381 = vxpose.xlu0.b32.cont [6/16] %v365, 128
        %382 = vxpose.xlu0.b32.cont [7/16] %v366, 128
        %383 = vxpose.xlu0.b32.cont [8/16] %v367, 128
        %384 = vxpose.xlu0.b32.cont [9/16] %v368, 128
        %385 = vxpose.xlu0.b32.cont [10/16] %v369, 128
        %386 = vxpose.xlu0.b32.cont [11/16] %v370, 128
        %387 = vxpose.xlu0.b32.cont [12/16] %v371, 128
        %388 = vxpose.xlu0.b32.cont [13/16] %v372, 128
        %389 = vxpose.xlu0.b32.cont [14/16] %v373, 128
        %390 = vxpose.xlu0.b32.cont [15/16] %v374, 128
        %391 = vxpose.xlu0.b32.end [16/16] %v375, 128
        %v392 = vpop.trf.xlu0
        %v393 = vpop.trf.xlu0
        %v394 = vpop.trf.xlu0
        %v395 = vpop.trf.xlu0
        %v396 = vpop.trf.xlu0
        %v397 = vpop.trf.xlu0
        %v398 = vpop.trf.xlu0
        %v399 = vpop.trf.xlu0
        %v400 = vpop.trf.xlu0
        %v401 = vpop.trf.xlu0
        %v402 = vpop.trf.xlu0
        %v403 = vpop.trf.xlu0
        %v404 = vpop.trf.xlu0
        %v405 = vpop.trf.xlu0
        %v406 = vpop.trf.xlu0
        %v407 = vpop.trf.xlu0
        %s408 = sld [smem:[#allocation2]]
        %v409 = vstv %s408
        %v410 = vadd.f32 %v392, %v409
        %s411 = sld [smem:[#allocation2 + $0x1]]
        %v412 = vstv %s411
        %v413 = vadd.f32 %v392, %v412
        %414 = vst [vmem:[%s204] sm:$0x1] %v410
        %415 = vst [vmem:[%s204] sm:$0x2] %v413
        %v416 = vxor.u32 %v410, 2147483648
        %v417 = vmul.f32 %v416, 1.442695
        %v418 = vpow.pop %v417
        %v419 = vadd.f32 %v418, 1.0
        %v420 = vrcp.pop %v419
        %v421 = vmul.f32 1.0, %v420
        %422 = vst [vmem:[%s204 + $0x2] sm:$0x1] %v421
        %v423 = vtanh.pop %v413
        %v424 = vadd.f32 %v423, 1.0
        %425 = vst [vmem:[%s204 + $0x2] sm:$0x2] %v424
        %p426 = scmp.lt.s32.totalorder %s15, 1
        %s427 = scalar_select %p426, %s15, 1
        %s428 = smul.addr %s427, 4
        %s429 = scalar_lea.vmem %s3, %s428
        // Predicated region
        $region37: #{mlp_embedding_forward.1} parent=31 // pred_check
          %p430 = pneg %p101
        $region38: #{mlp_embedding_forward.1} parent=31 // pred_check_branch
          %432 = sbr.rel (%p430) target = $region40
        $region39: #{mlp_embedding_forward.1} parent=31 // pred_region
          _
        $region40: #{mlp_embedding_forward.1} parent=31 // pred_fallthru
          _
      $region32: #{mlp_embedding_forward.1} parent=5 // pred_fallthru
        _
      %p433 = scmp.le.s32.totalorder 2, %s10
      // Predicated region
      $region41: #{mlp_embedding_forward.1} parent=5 // pred_check
        %p434 = pneg %p433
      $region42: #{mlp_embedding_forward.1} parent=5 // pred_check_branch
        %436 = sbr.rel (%p434) target = $region44
      $region43: #{mlp_embedding_forward.1} parent=5 // pred_region
        %s437 = ssub.s32 %s10, 2
        // Predicated region
        $region45: #{mlp_embedding_forward.1} parent=43 // pred_check
          %p438 = pneg %p107
        $region46: #{mlp_embedding_forward.1} parent=43 // pred_check_branch
          %440 = sbr.rel (%p438) target = $region48
        $region47: #{mlp_embedding_forward.1} parent=43 // pred_region
          %p441 = scmp.lt.s32.totalorder %s16, 1
          %s442 = scalar_select %p441, %s16, 1
          %s443 = smul.addr %s442, 4
          %s444 = scalar_lea.vmem %s3, %s443
        $region48: #{mlp_embedding_forward.1} parent=43 // pred_fallthru
          _
      $region44: #{mlp_embedding_forward.1} parent=5 // pred_fallthru
        _
    $region6: #{mlp_embedding_forward.1} parent=1 // loop_footer
      %s14 = sadd.s32 1, %s10
    $region7: #{mlp_embedding_forward.1} parent=1 // loop_footer_branch
      %9 = sbr.rel target = $region3
    $region8: #{mlp_embedding_forward.1} parent=1 // loop_exit
      _
    %445 = vsyncpa [#allocation3], 1
    %s446 = scalar_lea.sflag [#allocation3], 1
    %447 = vsyncpa %s446, 1

</llo_original>
